<compile_context>
chip_gen: v6e
topology: v6e:2x2x1
jax: 0.10.0
libtpu: 0.0.40
codegen_flags: <defaults>
</compile_context>

<pallas_src>
import math

import jax
import jax.numpy as jnp
import numpy as np
from jax.experimental import pallas as pl
from jax.experimental.pallas import tpu as pltpu


# ----------------------------- configuration --------------------------------
D_MODEL = 32
N_HEADS = 4
N_LEVELS = 2
N_POINTS = 2
D_HEAD = D_MODEL // N_HEADS

N_BATCH = 2
LEN_Q = 8
SPATIAL_SHAPES = ((8, 8), (4, 4))          # (H_l, W_l) per level
LEVEL_START = (0, 64)                      # start index of each level in Len_in
LEN_IN = sum(h * w for h, w in SPATIAL_SHAPES)   # 80
TILE_Q = 8                                 # query rows per grid step (mult of 8)


# ------------------------ stage 1: value projection --------------------------
def _value_proj_kernel(x_ref, w_ref, b_ref, o_ref):
    v = jnp.dot(x_ref[...], w_ref[...],
                preferred_element_type=jnp.float32) + b_ref[...]
    # TODO(synk): input_padding_mask is None in this synthetic setup; with a
    # mask, zero the masked rows of `v` here before the bf16 cast.
    o_ref[...] = v.astype(jnp.bfloat16)


def value_proj_pallas(x2, Wv, bv, n_batch, len_in):
    """x2: (N*Lin, C) f32 -> bf16 value slab (N*Lin, C), bias folded."""
    NLin, C = x2.shape
    assert NLin == n_batch * len_in
    return pl.pallas_call(
        _value_proj_kernel,
        out_shape=jax.ShapeDtypeStruct((NLin, C), jnp.bfloat16),
        grid_spec=pltpu.PrefetchScalarGridSpec(
            num_scalar_prefetch=0,
            grid=(n_batch,),
            in_specs=[
                pl.BlockSpec((len_in, C), lambda n: (n, 0)),
                pl.BlockSpec((C, C), lambda n: (0, 0)),
                pl.BlockSpec((1, C), lambda n: (0, 0)),
            ],
            out_specs=pl.BlockSpec((len_in, C), lambda n: (n, 0)),
        ),
        compiler_params=pltpu.CompilerParams(
            dimension_semantics=("parallel",)),
    )(x2, Wv, bv)


# -------------------- stage 2: deformable attention kernel -------------------
def make_msda_kernel(spatial_shapes, level_start, tile_q,
                     n_heads, n_levels, n_points, d_model):
    H, L, P = n_heads, n_levels, n_points
    C = d_model
    Dh = C // H
    LP = L * P
    TQ = tile_q

    def kernel(q_ref, ref_ref, val_ref,
               wqa_ref, bqa_ref, wout_ref, bout_ref, out_ref):
        q = q_ref[...]          # (TQ, C)   f32
        refp = ref_ref[...]     # (TQ, 2L)  f32: [l0_x, l0_y, l1_x, l1_y, ...]

        # Fused sampling-offset + attention-logit projection (f32; tiny at
        # C=32 — pre-cast weights to bf16 at production C=256).
        proj = jnp.dot(q, wqa_ref[...],
                       preferred_element_type=jnp.float32) + bqa_ref[...]
        off = proj[:, :H * LP * 2]          # (TQ, H*L*P*2)
        logit = proj[:, H * LP * 2:]        # (TQ, H*L*P)

        # Per-head softmax over (levels * points); exact divide so the
        # attention weights sum to exactly 1.
        attn = []
        for h in range(H):
            lg = logit[:, h * LP:(h + 1) * LP]
            e = jnp.exp(lg - jnp.max(lg, axis=-1, keepdims=True))
            attn.append(e / jnp.sum(e, axis=-1, keepdims=True))   # (TQ, LP)

        # Per-level gather: heads stacked along M, one MXU call per level.
        total = jnp.zeros((H * TQ, C), jnp.float32)
        for l in range(L):
            Hl, Wl = spatial_shapes[l]
            Sl = Hl * Wl
            base = int(level_start[l])
            inv_wl = 1.0 / float(Wl)
            inv_hl = 1.0 / float(Hl)
            # Level-local column iota: the compare domain is only this level's
            # S_l columns, so out-of-level / out-of-batch aliasing of corner
            # indices is structurally impossible.
            col = jax.lax.broadcasted_iota(jnp.int32, (TQ, Sl), 1)

            head_samps = []
            for h in range(H):
                a_h = attn[h]
                samp = jnp.zeros((TQ, Sl), jnp.float32)
                for p in range(P):
                    ox = ((h * L + l) * P + p) * 2
                    # sampling locations (grid_sample semantics:
                    # align_corners=False, padding_mode='zeros')
                    locx = refp[:, 2 * l:2 * l + 1] + off[:, ox:ox + 1] * inv_wl
                    locy = refp[:, 2 * l + 1:2 * l + 2] + off[:, ox + 1:ox + 2] * inv_hl
                    px = locx * float(Wl) - 0.5
                    py = locy * float(Hl) - 0.5
                    x0 = jnp.floor(px)
                    y0 = jnp.floor(py)
                    fx = px - x0
                    fy = py - y0
                    # Per-corner validity (exact-zero f32 masks also kill any
                    # in-level row-wrap match, e.g. x0 == -1 or x0 == Wl-1).
                    vx0 = ((x0 >= 0.0) & (x0 <= float(Wl - 1))).astype(jnp.float32)
                    vx1 = ((x0 >= -1.0) & (x0 <= float(Wl - 2))).astype(jnp.float32)
                    vy0 = ((y0 >= 0.0) & (y0 <= float(Hl - 1))).astype(jnp.float32)
                    vy1 = ((y0 >= -1.0) & (y0 <= float(Hl - 2))).astype(jnp.float32)

                    aw = a_h[:, l * P + p:l * P + p + 1]          # (TQ, 1)
                    wx0 = (1.0 - fx) * vx0
                    wx1 = fx * vx1
                    wy0 = (1.0 - fy) * vy0 * aw
                    wy1 = fy * vy1 * aw

                    # base corner (0,0); other corners are +1, +Wl, +Wl+1
                    idx00 = (y0 * float(Wl) + x0).astype(jnp.int32)  # (TQ, 1)

                    samp = (samp
                            + jnp.where(col == idx00,          wx0 * wy0, 0.0)
                            + jnp.where(col == idx00 + 1,      wx1 * wy0, 0.0)
                            + jnp.where(col == idx00 + Wl,     wx0 * wy1, 0.0)
                            + jnp.where(col == idx00 + Wl + 1, wx1 * wy1, 0.0))
                head_samps.append(samp)

            samp_l = jnp.concatenate(head_samps, axis=0)          # (H*TQ, Sl)
            val_l = val_ref[base:base + Sl, :]                    # (Sl, C) bf16
            total = total + jnp.dot(samp_l.astype(jnp.bfloat16), val_l,
                                    preferred_element_type=jnp.float32)

        # Fold head rows back: head h contributes rows [h*TQ,(h+1)*TQ) and
        # output columns [h*Dh,(h+1)*Dh).  Static slices, no head_id masks.
        out_heads = jnp.concatenate(
            [total[h * TQ:(h + 1) * TQ, h * Dh:(h + 1) * Dh] for h in range(H)],
            axis=1)                                               # (TQ, C)

        out_ref[...] = jnp.dot(out_heads, wout_ref[...],
                               preferred_element_type=jnp.float32) + bout_ref[...]

    return kernel


def ms_deform_attn_pallas(query, input_flatten, reference_points, params,
                          spatial_shapes, level_start, tile_q=TILE_Q):
    """query (N,Lq,C), input_flatten (N,Lin,C), reference_points (N,Lq,L,2)."""
    Wv, bv, Wo, bo, Wa, ba, Wout, bout = params
    N, Lq, C = query.shape
    _, Lin, _ = input_flatten.shape
    L = len(spatial_shapes)
    H, P = N_HEADS, N_POINTS
    assert sum(h * w for h, w in spatial_shapes) == Lin
    assert Lq % tile_q == 0 and tile_q % 8 == 0

    NLq, NLin = N * Lq, N * Lin
    q2 = query.reshape(NLq, C)
    x2 = input_flatten.reshape(NLin, C)
    ref2 = reference_points.reshape(NLq, L * 2)

    # Stage 1: value projection once, bias folded, bf16 slab.
    value_bf = value_proj_pallas(x2, Wv, bv, N, Lin)

    # Fuse sampling-offset + attention-weight projections into one matmul.
    Wqa = jnp.concatenate([Wo, Wa], axis=1)       # (C, H*L*P*2 + H*L*P)
    bqa = jnp.concatenate([bo, ba], axis=1)       # (1, H*L*P*2 + H*L*P)

    kernel = make_msda_kernel(spatial_shapes, level_start, tile_q,
                              H, L, P, C)

    nqt = Lq // tile_q
    grid = (N, nqt)                               # both axes independent

    # Advisory cost for XLA scheduling around the custom call.
    flops = 2 * (NLq * C * Wqa.shape[1]           # offset/logit projection
                 + H * NLq * Lin * C              # per-head gather matmuls
                 + NLq * C * C)                   # output projection
    transcendentals = NLq * H * L * P             # softmax exps
    bytes_accessed = (q2.size + ref2.size + Wqa.size + bqa.size
                      + Wout.size + bout.size + NLq * C) * 4 + value_bf.size * 2
    cost = pl.CostEstimate(flops=flops, transcendentals=transcendentals,
                           bytes_accessed=bytes_accessed)

    # NOTE: at production sizes (C=256, Lin~20k) the value slab needs per-level
    # / per-Lin tiling and an explicit vmem_limit_bytes re-derived for v7x's
    # 64 MiB VMEM; at these toy shapes everything fits the default budget.
    # NOTE (v5e): the (TQ, 32) f32 output is lane-narrow (masked stores); if C
    # stays 32 in production, present a lane-dense output slab instead.
    out2 = pl.pallas_call(
        kernel,
        out_shape=jax.ShapeDtypeStruct((NLq, C), jnp.float32),
        grid_spec=pltpu.PrefetchScalarGridSpec(
            num_scalar_prefetch=0,
            grid=grid,
            in_specs=[
                pl.BlockSpec((tile_q, C), lambda n, qi: (n * nqt + qi, 0)),
                pl.BlockSpec((tile_q, 2 * L), lambda n, qi: (n * nqt + qi, 0)),
                pl.BlockSpec((Lin, C), lambda n, qi: (n, 0)),        # per-batch value
                pl.BlockSpec(Wqa.shape, lambda n, qi: (0, 0)),
                pl.BlockSpec(bqa.shape, lambda n, qi: (0, 0)),
                pl.BlockSpec(Wout.shape, lambda n, qi: (0, 0)),
                pl.BlockSpec(bout.shape, lambda n, qi: (0, 0)),
            ],
            out_specs=pl.BlockSpec((tile_q, C), lambda n, qi: (n * nqt + qi, 0)),
        ),
        compiler_params=pltpu.CompilerParams(
            dimension_semantics=("parallel", "parallel")),
        cost_estimate=cost,
    )(q2, ref2, value_bf, Wqa, bqa, Wout, bout)
    return out2.reshape(N, Lq, C)


# ------------------------- pure-JAX reference (check) ------------------------
def ms_deform_attn_reference(query, input_flatten, reference_points, params,
                             spatial_shapes, level_start):
    Wv, bv, Wo, bo, Wa, ba, Wout, bout = params
    N, Lq, C = query.shape
    H, L, P, Dh = N_HEADS, N_LEVELS, N_POINTS, D_HEAD

    value = input_flatten @ Wv + bv                                  # (N, Lin, C)
    off = (query @ Wo + bo).reshape(N, Lq, H, L, P, 2)
    attn = jax.nn.softmax((query @ Wa + ba).reshape(N, Lq, H, L * P), axis=-1)
    attn = attn.reshape(N, Lq, H, L, P)
    normalizer = jnp.array([[w, h] for (h, w) in spatial_shapes], jnp.float32)
    loc = (reference_points[:, :, None, :, None, :] +
           off / normalizer[None, None, None, :, None, :])           # (N,Lq,H,L,P,2)

    val = value.reshape(N, -1, H, Dh)
    out = jnp.zeros((N, Lq, H, Dh), jnp.float32)
    for l, (Hl, Wl) in enumerate(spatial_shapes):
        Sl = Hl * Wl
        v_l = val[:, level_start[l]:level_start[l] + Sl]             # (N,Sl,H,Dh)
        v_l = jnp.transpose(v_l, (0, 2, 1, 3))                       # (N,H,Sl,Dh)
        px = loc[:, :, :, l, :, 0] * Wl - 0.5                        # (N,Lq,H,P)
        py = loc[:, :, :, l, :, 1] * Hl - 0.5
        x0 = jnp.floor(px)
        y0 = jnp.floor(py)
        fx = px - x0
        fy = py - y0
        for dy in (0, 1):
            for dx in (0, 1):
                xi = x0 + dx
                yi = y0 + dy
                w = (fx if dx else 1 - fx) * (fy if dy else 1 - fy)
                valid = ((xi >= 0) & (xi < Wl) & (yi >= 0) &
                         (yi < Hl)).astype(jnp.float32)
                idx = jnp.clip(yi * Wl + xi, 0, Sl - 1).astype(jnp.int32)
                idx_t = jnp.transpose(idx, (0, 2, 1, 3)).reshape(N, H, Lq * P, 1)
                gathered = jnp.take_along_axis(v_l, idx_t, axis=2)   # (N,H,Lq*P,Dh)
                wt = attn[:, :, :, l, :] * w * valid                 # (N,Lq,H,P)
                wt_t = jnp.transpose(wt, (0, 2, 1, 3)).reshape(N, H, Lq * P, 1)
                contrib = (wt_t * gathered).reshape(N, H, Lq, P, Dh).sum(axis=3)
                out = out + jnp.transpose(contrib, (0, 2, 1, 3))
    out = out.reshape(N, Lq, C)
    return out @ Wout + bout


# ------------------------------ parameter init -------------------------------
def init_params(key):
    C, H, L, P = D_MODEL, N_HEADS, N_LEVELS, N_POINTS
    k_v, k_o = jax.random.split(key)

    # sampling_offsets: zero weight, structured bias (as in _reset_parameters)
    Wo = jnp.zeros((C, H * L * P * 2), jnp.float32)
    thetas = jnp.arange(H, dtype=jnp.float32) * (2.0 * math.pi / H)
    grid = jnp.stack([jnp.cos(thetas), jnp.sin(thetas)], -1)         # (H, 2)
    grid = grid / jnp.max(jnp.abs(grid), axis=-1, keepdims=True)
    grid = jnp.tile(grid[:, None, None, :], (1, L, P, 1))            # (H,L,P,2)
    grid = grid * jnp.arange(1, P + 1, dtype=jnp.float32)[None, None, :, None]
    bo = grid.reshape(1, -1)

    # attention_weights: zero weight, zero bias
    Wa = jnp.zeros((C, H * L * P), jnp.float32)
    ba = jnp.zeros((1, H * L * P), jnp.float32)

    # value_proj / output_proj: xavier_uniform weight, zero bias
    bound = math.sqrt(6.0 / (C + C))
    Wv = jax.random.uniform(k_v, (C, C), jnp.float32, -bound, bound)
    bv = jnp.zeros((1, C), jnp.float32)
    Wout = jax.random.uniform(k_o, (C, C), jnp.float32, -bound, bound)
    bout = jnp.zeros((1, C), jnp.float32)
    return (Wv, bv, Wo, bo, Wa, ba, Wout, bout)


# ----------------------------------- main ------------------------------------
if __name__ == "__main__":
    # sanity: level_start must be the prefix sum of the level sizes
    acc = 0
    for l, (h, w) in enumerate(SPATIAL_SHAPES):
        assert LEVEL_START[l] == acc
        acc += h * w

    key = jax.random.PRNGKey(0)
    k1, k2, k3, k4 = jax.random.split(key, 4)

    query = jax.random.normal(k1, (N_BATCH, LEN_Q, D_MODEL), jnp.float32)
    input_flatten = jax.random.normal(k2, (N_BATCH, LEN_IN, D_MODEL), jnp.float32)
    reference_points = jax.random.uniform(
        k3, (N_BATCH, LEN_Q, N_LEVELS, 2), jnp.float32)
    params = init_params(k4)

    out = ms_deform_attn_pallas(query, input_flatten, reference_points, params,
                                SPATIAL_SHAPES, LEVEL_START)
    out = jax.block_until_ready(out)

    ref = ms_deform_attn_reference(query, input_flatten, reference_points,
                                   params, SPATIAL_SHAPES, LEVEL_START)
    # bf16 value slab + bf16 gather matmul operands -> loosened tolerance.
    np.testing.assert_allclose(np.asarray(out), np.asarray(ref),
                               rtol=2e-2, atol=2e-2)
    print("KERNEL_OK")
</pallas_src>

<mosaic_0001>
module attributes {stable_mosaic.version = 11 : i64} {
  func.func @_value_proj_kernel(%arg0: i32, %arg1: memref<80x32xf32, #tpu.memory_space<vmem>>, %arg2: memref<32x32xf32, #tpu.memory_space<vmem>>, %arg3: memref<1x32xf32, #tpu.memory_space<vmem>>, %arg4: memref<80x32xbf16, #tpu.memory_space<vmem>>) attributes {dimension_semantics = [#tpu.dimension_semantics<parallel>], iteration_bounds = array<i64: 2>, scalar_prefetch = 0 : i64, scratch_operands = 0 : i64, tpu.core_type = #tpu.core_type<tc>, window_params = [{transform_indices = @transform_0, window_bounds = array<i64: 80, 32>}, {pipeline_mode = #tpu.pipeline_mode<synchronous>, transform_indices = @transform_1, window_bounds = array<i64: 32, 32>}, {pipeline_mode = #tpu.pipeline_mode<synchronous>, transform_indices = @transform_2, window_bounds = array<i64: 1, 32>}, {transform_indices = @transform_3, window_bounds = array<i64: 80, 32>}]} {
    %c0 = arith.constant 0 : index
    %c0_0 = arith.constant 0 : index
    %0 = vector.load %arg1[%c0, %c0_0] : memref<80x32xf32, #tpu.memory_space<vmem>>, vector<80x32xf32>
    %c0_1 = arith.constant 0 : index
    %c0_2 = arith.constant 0 : index
    %1 = vector.load %arg2[%c0_1, %c0_2] : memref<32x32xf32, #tpu.memory_space<vmem>>, vector<32x32xf32>
    %cst = arith.constant dense<0.000000e+00> : vector<80x32xf32>
    %2 = tpu.matmul %0, %1, %cst {dimension_numbers = #tpu.dot_dimension_numbers<[1], [0], [0], [1], [0, 0, 1, 1], [], []>} : vector<80x32xf32>, vector<32x32xf32>, vector<80x32xf32> -> vector<80x32xf32>
    %c0_3 = arith.constant 0 : index
    %c0_4 = arith.constant 0 : index
    %3 = vector.load %arg3[%c0_3, %c0_4] : memref<1x32xf32, #tpu.memory_space<vmem>>, vector<1x32xf32>
    %4 = vector.broadcast %3 : vector<1x32xf32> to vector<80x32xf32>
    %5 = arith.addf %2, %4 : vector<80x32xf32>
    %6 = arith.truncf %5 : vector<80x32xf32> to vector<80x32xbf16>
    %c0_5 = arith.constant 0 : index
    %c0_6 = arith.constant 0 : index
    %7 = vector.load %arg4[%c0_5, %c0_6] : memref<80x32xbf16, #tpu.memory_space<vmem>>, vector<80x32xbf16>
    tpu.vector_store %arg4[%c0_5, %c0_6], %6 {strides = array<i32>} : memref<80x32xbf16, #tpu.memory_space<vmem>>, vector<80x32xbf16>,
    return
  }
  func.func @transform_0(%arg0: i32) -> (i32, i32) {
    %c0_i32 = arith.constant 0 : i32
    %c0_i32_0 = arith.constant 0 : i32
    return %arg0, %c0_i32 : i32, i32
  }
  func.func @transform_1(%arg0: i32) -> (i32, i32) {
    %c0_i32 = arith.constant 0 : i32
    %c0_i32_0 = arith.constant 0 : i32
    %c0_i32_1 = arith.constant 0 : i32
    return %c0_i32, %c0_i32_0 : i32, i32
  }
  func.func @transform_2(%arg0: i32) -> (i32, i32) {
    %c0_i32 = arith.constant 0 : i32
    %c0_i32_0 = arith.constant 0 : i32
    %c0_i32_1 = arith.constant 0 : i32
    return %c0_i32, %c0_i32_0 : i32, i32
  }
  func.func @transform_3(%arg0: i32) -> (i32, i32) {
    %c0_i32 = arith.constant 0 : i32
    %c0_i32_0 = arith.constant 0 : i32
    return %arg0, %c0_i32 : i32, i32
  }
}

</mosaic_0001>

<llo_original>
// kernel: tpu_custom_call.1
$region0: #{tpu_custom_call.1}
  #allocation0 [shape = 'u32[]', space=smem, size = 0x4, offset = 0x4, fixed_abs, tag = 'smem constant byte address 0x4 - core index']
  #allocation1 [shape = 'u32[144,128]{1,0:T(1,128)}', space=vmem, size = 0x12000, scoped, tag = 'internal scratch']
  %s0 = inlined_call_operand.vmem [shape: f32[160,32], index: 0, kind: input, shape index: {}]
  %s1 = inlined_call_operand.vmem [shape: f32[32,32], index: 1, kind: input, shape index: {}]
  %s2 = inlined_call_operand.vmem [shape: f32[1,32], index: 2, kind: input, shape index: {}]
  %s3 = inlined_call_operand.vmem [shape: bf16[160,32], index: 3, kind: output, shape index: {}]
  %s4 = sld [smem:[#allocation0]]
  $region45: #{tpu_custom_call.1} parent=0
    _
  %s6 = ssub.s32 1, %s4
  %s7 = scalar_select 0, %s6, %s4
  loop: start=0, step=1, limit=4
  $region2: #{tpu_custom_call.1} parent=0 // loop_pre_header
    _
  $region3: #{tpu_custom_call.1} parent=0 // loop_header
    %s9 = sphi 0, %s13
    %p10 = scmp.ge.s32.totalorder %s9, 4
    %s19 = sphi 0, %s21
    %s22 = sphi 0, %s19
    %s23 = sphi 0, %s22
    %s39 = sphi 0, %s23
    %s43 = sphi 0, %s43
    %s45 = sphi 0, %s43
    %s46 = sphi 0, %s45
    %s60 = sphi 0, %s46
    %s64 = sphi 0, %s64
    %s66 = sphi 0, %s64
    %s67 = sphi 0, %s66
    %s81 = sphi 0, %s67
    %s87 = sphi 0, %s89
    %s90 = sphi 0, %s87
    %s91 = sphi 0, %s90
    %s107 = sphi 0, %s91
  $region4: #{tpu_custom_call.1} parent=0 // loop_header_branch
    %12 = sbr.rel (%p10) target = $region8
  $region5: #{tpu_custom_call.1} parent=0 // loop_body
    %s14 = ssub.s32 %s9, 1
    %s15 = ssub.s32 %s9, 2
    %s16 = sadd.s32 %s9, 1
    %s17 = ssub.s32 %s9, %s16
    %p18 = scmp.eq.s32.totalorder %s17, 0
    %s20 = sadd.s32 %s19, 1
    %s21 = scalar_select %p18, %s19, %s20
    %p24 = pneg %p18
    %p25 = scmp.eq.s32.totalorder %s9, 1
    %p26 = por %p24, %p25
    %p27 = scmp.ne.s32.totalorder %s19, %s22
    %p28 = scmp.eq.s32.totalorder %s9, 0
    %p29 = por %p27, %p28
    %p30 = scmp.ne.s32.totalorder %s19, %s22
    %p31 = scmp.eq.s32.totalorder %s14, 1
    %p32 = por %p30, %p31
    %p33 = scmp.ne.s32.totalorder %s22, %s23
    %p34 = scmp.eq.s32.totalorder %s14, 0
    %p35 = por %p33, %p34
    %p36 = scmp.ne.s32.totalorder %s22, %s23
    %p37 = scmp.eq.s32.totalorder %s15, 1
    %p38 = por %p36, %p37
    %p40 = scmp.ne.s32.totalorder %s23, %s39
    %p41 = scmp.eq.s32.totalorder %s15, 0
    %p42 = por %p40, %p41
    %s44 = sadd.s32 %s43, 1
    %p47 = scmp.eq.s32.totalorder %s9, 1
    %p48 = scmp.ne.s32.totalorder %s43, %s45
    %p49 = scmp.eq.s32.totalorder %s9, 0
    %p50 = por %p48, %p49
    %p51 = scmp.ne.s32.totalorder %s43, %s45
    %p52 = scmp.eq.s32.totalorder %s14, 1
    %p53 = por %p51, %p52
    %p54 = scmp.ne.s32.totalorder %s45, %s46
    %p55 = scmp.eq.s32.totalorder %s14, 0
    %p56 = por %p54, %p55
    %p57 = scmp.ne.s32.totalorder %s45, %s46
    %p58 = scmp.eq.s32.totalorder %s15, 1
    %p59 = por %p57, %p58
    %p61 = scmp.ne.s32.totalorder %s46, %s60
    %p62 = scmp.eq.s32.totalorder %s15, 0
    %p63 = por %p61, %p62
    %s65 = sadd.s32 %s64, 1
    %p68 = scmp.eq.s32.totalorder %s9, 1
    %p69 = scmp.ne.s32.totalorder %s64, %s66
    %p70 = scmp.eq.s32.totalorder %s9, 0
    %p71 = por %p69, %p70
    %p72 = scmp.ne.s32.totalorder %s64, %s66
    %p73 = scmp.eq.s32.totalorder %s14, 1
    %p74 = por %p72, %p73
    %p75 = scmp.ne.s32.totalorder %s66, %s67
    %p76 = scmp.eq.s32.totalorder %s14, 0
    %p77 = por %p75, %p76
    %p78 = scmp.ne.s32.totalorder %s66, %s67
    %p79 = scmp.eq.s32.totalorder %s15, 1
    %p80 = por %p78, %p79
    %p82 = scmp.ne.s32.totalorder %s67, %s81
    %p83 = scmp.eq.s32.totalorder %s15, 0
    %p84 = por %p82, %p83
    %s85 = ssub.s32 %s9, %s16
    %p86 = scmp.eq.s32.totalorder %s85, 0
    %s88 = sadd.s32 %s87, 1
    %s89 = scalar_select %p86, %s87, %s88
    %p92 = pneg %p86
    %p93 = scmp.eq.s32.totalorder %s9, 1
    %p94 = por %p92, %p93
    %p95 = scmp.ne.s32.totalorder %s87, %s90
    %p96 = scmp.eq.s32.totalorder %s9, 0
    %p97 = por %p95, %p96
    %p98 = scmp.ne.s32.totalorder %s87, %s90
    %p99 = scmp.eq.s32.totalorder %s14, 1
    %p100 = por %p98, %p99
    %p101 = scmp.ne.s32.totalorder %s90, %s91
    %p102 = scmp.eq.s32.totalorder %s14, 0
    %p103 = por %p101, %p102
    %p104 = scmp.ne.s32.totalorder %s90, %s91
    %p105 = scmp.eq.s32.totalorder %s15, 1
    %p106 = por %p104, %p105
    %p108 = scmp.ne.s32.totalorder %s91, %s107
    %p109 = scmp.eq.s32.totalorder %s15, 0
    %p110 = por %p108, %p109
    %p111 = scmp.le.s32.totalorder 1, %s9
    %p112 = scmp.lt.s32.totalorder %s9, 3
    %p113 = pnand %p111, %p112
    %p114 = pneg %p113
    // Predicated region
    $region9: #{tpu_custom_call.1} parent=5 // pred_check
      _
    $region10: #{tpu_custom_call.1} parent=5 // pred_check_branch
      %116 = sbr.rel (%p113) target = $region12
    $region11: #{tpu_custom_call.1} parent=5 // pred_region
      %s117 = ssub.s32 %s9, 1
      // Predicated region
      $region13: #{tpu_custom_call.1} parent=11 // pred_check
        %p118 = pneg %p56
      $region14: #{tpu_custom_call.1} parent=11 // pred_check_branch
        %120 = sbr.rel (%p118) target = $region16
      $region15: #{tpu_custom_call.1} parent=11 // pred_region
        _
      $region16: #{tpu_custom_call.1} parent=11 // pred_fallthru
        _
      // Predicated region
      $region17: #{tpu_custom_call.1} parent=11 // pred_check
        %p121 = pneg %p77
      $region18: #{tpu_custom_call.1} parent=11 // pred_check_branch
        %123 = sbr.rel (%p121) target = $region20
      $region19: #{tpu_custom_call.1} parent=11 // pred_region
        _
      $region20: #{tpu_custom_call.1} parent=11 // pred_fallthru
        _
    $region12: #{tpu_custom_call.1} parent=5 // pred_fallthru
      _
    %p124 = scmp.lt.s32.totalorder %s9, 2
    // Predicated region
    $region21: #{tpu_custom_call.1} parent=5 // pred_check
      %p125 = pneg %p124
    $region22: #{tpu_custom_call.1} parent=5 // pred_check_branch
      %127 = sbr.rel (%p125) target = $region24
    $region23: #{tpu_custom_call.1} parent=5 // pred_region
      // Predicated region
      $region25: #{tpu_custom_call.1} parent=23 // pred_check
        %p128 = pneg %p29
      $region26: #{tpu_custom_call.1} parent=23 // pred_check_branch
        %130 = sbr.rel (%p128) target = $region28
      $region27: #{tpu_custom_call.1} parent=23 // pred_region
        %s131 = smul.u32 10, %s9
        %p132 = scmp.lt.s32.totalorder %s131, 19
        %s133 = scalar_select %p132, %s131, 19
        %s134 = smul.addr %s133, 8
        %s135 = scalar_lea.vmem %s0, %s134
        %s136 = smul.u32 10, %s9
      $region28: #{tpu_custom_call.1} parent=23 // pred_fallthru
        _
    $region24: #{tpu_custom_call.1} parent=5 // pred_fallthru
      _
    %p137 = scmp.le.s32.totalorder 1, %s9
    %p138 = scmp.lt.s32.totalorder %s9, 3
    %p139 = pnand %p137, %p138
    %p140 = pneg %p139
    // Predicated region
    $region29: #{tpu_custom_call.1} parent=5 // pred_check
      _
    $region30: #{tpu_custom_call.1} parent=5 // pred_check_branch
      %142 = sbr.rel (%p139) target = $region32
    $region31: #{tpu_custom_call.1} parent=5 // pred_region
      %s143 = ssub.s32 %s9, 1
      %s144 = smul.u32 10, %s14
      %p145 = scmp.lt.s32.totalorder %s144, 19
      %s146 = scalar_select %p145, %s144, 19
      %s147 = smul.addr %s146, 8
      %s148 = scalar_lea.vmem %s0, %s147
      %p149 = pneg %p35
      %p150 = pneg %p32
      %p151 = pneg %p56
      %p152 = pneg %p53
      %p153 = pneg %p77
      %p154 = pneg %p74
      %p155 = pneg %p103
      %p156 = pneg %p100
      %s157 = smul.u32 10, %s14
      %p158 = scmp.lt.s32.totalorder %s157, 19
      %s159 = scalar_select %p158, %s157, 19
      %s160 = smul.addr %s159, 4
      %s161 = scalar_lea.vmem %s3, %s160
      %s162 = smul.u32 10, %s14
      %p163 = scmp.lt.s32.totalorder %s162, 19
      %s164 = scalar_select %p163, %s162, 19
      %s165 = smul.addr %s164, 8
      %s166 = scalar_lea.vmem %s0, %s165
      %s167 = smul.u32 10, %s14
      %s168 = smul.u32 10, %s14
      %p169 = scmp.lt.s32.totalorder %s168, 19
      %s170 = scalar_select %p169, %s168, 19
      %s171 = smul.addr %s170, 4
      %s172 = scalar_lea.vmem %s3, %s171
      %s173 = smul.u32 10, %s14
      %v174 = vld [vmem:[%s166] sm:$0xff]
      %v175 = vld [vmem:[%s166 + $0x8] sm:$0xff]
      %v176 = vld [vmem:[%s166 + $0x10] sm:$0xff]
      %v177 = vld [vmem:[%s166 + $0x18] sm:$0xff]
      %v178 = vld [vmem:[%s166 + $0x20] sm:$0xff]
      %v179 = vld [vmem:[%s166 + $0x28] sm:$0xff]
      %v180 = vld [vmem:[%s166 + $0x30] sm:$0xff]
      %v181 = vld [vmem:[%s166 + $0x38] sm:$0xff]
      %v182 = vld [vmem:[%s166 + $0x40] sm:$0xff]
      %v183 = vld [vmem:[%s166 + $0x48] sm:$0xff]
      %v184 = vld [vmem:[%s1] sm:$0xff]
      %v185 = vld [vmem:[%s1 + $0x8] sm:$0xff]
      %v186 = vld [vmem:[%s1 + $0x10] sm:$0xff]
      %v187 = vld [vmem:[%s1 + $0x18] sm:$0xff]
      %v188 = vld [vmem:[%s2] sm:$0x1]
      %v190 = vlaneseq
      %v191 = vshrl.u32 %v190, 7
      %v192 = vsub.s32 0, %v191
      %v193 = vrot.slane %v188, %v192
      %vm195 = vcmask 261120
      %v197 = vsel %vm195, %v174, 0
      %v200 = vsel %vm195, %v175, 0
      %v203 = vsel %vm195, %v176, 0
      %v206 = vsel %vm195, %v177, 0
      %v209 = vsel %vm195, %v178, 0
      %v212 = vsel %vm195, %v179, 0
      %v215 = vsel %vm195, %v180, 0
      %v218 = vsel %vm195, %v181, 0
      %v221 = vsel %vm195, %v182, 0
      %v224 = vsel %vm195, %v183, 0
      %226 = vmatprep.subr.mxu0 0.0
      %227 = vmatpush1.msra.mxu0 0.0
      %228 = vmatprep.subr.mxu0 0.0
      %229 = vmatpush1.msra.mxu0 0.0
      %230 = vmatprep.subr.mxu0 0.0
      %231 = vmatpush1.msra.mxu0 0.0
      %232 = vmatprep.subr.mxu0 0.0
      %233 = vmatpush1.msra.mxu0 0.0
      %234 = vmatprep.subr.mxu0 0.0
      %235 = vmatpush1.msra.mxu0 0.0
      %236 = vmatprep.subr.mxu0 0.0
      %237 = vmatpush1.msra.mxu0 0.0
      %238 = vmatprep.subr.mxu0 0.0
      %239 = vmatpush1.msra.mxu0 0.0
      %240 = vmatprep.subr.mxu0 0.0
      %241 = vmatpush1.msra.mxu0 0.0
      %242 = vmatprep.subr.mxu0 0.0
      %243 = vmatpush1.msra.mxu0 0.0
      %244 = vmatprep.subr.mxu0 0.0
      %245 = vmatpush1.msra.mxu0 0.0
      %246 = vmatprep.subr.mxu0 0.0
      %247 = vmatpush1.msra.mxu0 0.0
      %248 = vmatprep.subr.mxu0 0.0
      %249 = vmatpush1.msra.mxu0 0.0
      %250 = vmatprep.subr.mxu0 0.0
      %251 = vmatpush1.msra.mxu0 %v187
      %252 = vmatprep.subr.mxu0 0.0
      %253 = vmatpush1.msra.mxu0 %v186
      %254 = vmatprep.subr.mxu0 0.0
      %255 = vmatpush1.msra.mxu0 %v185
      %256 = vmatprep.subr.mxu0 0.0
      %257 = vmatpush1.msra.mxu0 %v184
      %258 = vmatprep.subr.mxu0 0.0
      %259 = vmatpush2.msra.mxu0 0.0
      %260 = vmatprep.subr.mxu0 0.0
      %261 = vmatpush2.msra.mxu0 0.0
      %262 = vmatprep.subr.mxu0 0.0
      %263 = vmatpush2.msra.mxu0 0.0
      %264 = vmatprep.subr.mxu0 0.0
      %265 = vmatpush2.msra.mxu0 0.0
      %266 = vmatprep.subr.mxu0 0.0
      %267 = vmatpush2.msra.mxu0 0.0
      %268 = vmatprep.subr.mxu0 0.0
      %269 = vmatpush2.msra.mxu0 0.0
      %270 = vmatprep.subr.mxu0 0.0
      %271 = vmatpush2.msra.mxu0 0.0
      %272 = vmatprep.subr.mxu0 0.0
      %273 = vmatpush2.msra.mxu0 0.0
      %274 = vmatprep.subr.mxu0 0.0
      %275 = vmatpush2.msra.mxu0 0.0
      %276 = vmatprep.subr.mxu0 0.0
      %277 = vmatpush2.msra.mxu0 0.0
      %278 = vmatprep.subr.mxu0 0.0
      %279 = vmatpush2.msra.mxu0 0.0
      %280 = vmatprep.subr.mxu0 0.0
      %281 = vmatpush2.msra.mxu0 0.0
      %282 = vmatprep.subr.mxu0 0.0
      %283 = vmatpush2.msra.mxu0 0.0
      %284 = vmatprep.subr.mxu0 0.0
      %285 = vmatpush2.msra.mxu0 0.0
      %286 = vmatprep.subr.mxu0 0.0
      %287 = vmatpush2.msra.mxu0 0.0
      %288 = vmatprep.subr.mxu0 0.0
      %289 = vmatpush2.msra.mxu0 0.0
      %290 = vmatprep.mubr.f32.mxu0 0.0
      %291 = vmatmul.mubr.f32.gmra.mxu0 %v197
      %v292 = vpop.f32.mrf.mxu0
      %v293 = vadd.f32 %v193, %v292
      %v294 = vpop.f32.mrf.mxu0
      %295 = vmatprep.mubr.f32.mxu0 0.0
      %296 = vmatmul.mubr.f32.gmra.mxu0 %v200
      %v297 = vpop.f32.mrf.mxu0
      %v298 = vadd.f32 %v193, %v297
      %v299 = vpop.f32.mrf.mxu0
      %300 = vmatprep.mubr.f32.mxu0 0.0
      %301 = vmatmul.mubr.f32.gmra.mxu0 %v203
      %v302 = vpop.f32.mrf.mxu0
      %v303 = vadd.f32 %v193, %v302
      %v304 = vpop.f32.mrf.mxu0
      %305 = vmatprep.mubr.f32.mxu0 0.0
      %306 = vmatmul.mubr.f32.gmra.mxu0 %v206
      %v307 = vpop.f32.mrf.mxu0
      %v308 = vadd.f32 %v193, %v307
      %v309 = vpop.f32.mrf.mxu0
      %310 = vmatprep.mubr.f32.mxu0 0.0
      %311 = vmatmul.mubr.f32.gmra.mxu0 %v209
      %v312 = vpop.f32.mrf.mxu0
      %v313 = vadd.f32 %v193, %v312
      %v314 = vpop.f32.mrf.mxu0
      %315 = vmatprep.mubr.f32.mxu0 0.0
      %316 = vmatmul.mubr.f32.gmra.mxu0 %v212
      %v317 = vpop.f32.mrf.mxu0
      %v318 = vadd.f32 %v193, %v317
      %v319 = vpop.f32.mrf.mxu0
      %320 = vmatprep.mubr.f32.mxu0 0.0
      %321 = vmatmul.mubr.f32.gmra.mxu0 %v215
      %v322 = vpop.f32.mrf.mxu0
      %v323 = vadd.f32 %v193, %v322
      %v324 = vpop.f32.mrf.mxu0
      %325 = vmatprep.mubr.f32.mxu0 0.0
      %326 = vmatmul.mubr.f32.gmra.mxu0 %v218
      %v327 = vpop.f32.mrf.mxu0
      %v328 = vadd.f32 %v193, %v327
      %v329 = vpop.f32.mrf.mxu0
      %330 = vmatprep.mubr.f32.mxu0 0.0
      %331 = vmatmul.mubr.f32.gmra.mxu0 %v221
      %v332 = vpop.f32.mrf.mxu0
      %v333 = vadd.f32 %v193, %v332
      %v334 = vpop.f32.mrf.mxu0
      %335 = vmatprep.mubr.f32.mxu0 0.0
      %336 = vmatmul.mubr.f32.gmra.mxu0 %v224
      %v337 = vpop.f32.mrf.mxu0
      %v338 = vadd.f32 %v193, %v337
      %v339 = vpop.f32.mrf.mxu0
      %340 = vdwg.mxu0
      %v341 = vpack.c.bf16 %v298, %v293
      %v342 = vpack.c.bf16 %v308, %v303
      %v343 = vpack.c.bf16 %v318, %v313
      %v344 = vpack.c.bf16 %v328, %v323
      %v345 = vpack.c.bf16 %v338, %v333
      %v351 = vunpack.c.l.b16 %v341
      %v352 = vunpack.c.h.b16 %v341
      %v353 = vunpack.c.l.b16 %v342
      %v354 = vunpack.c.h.b16 %v342
      %v355 = vunpack.c.l.b16 %v343
      %v356 = vunpack.c.h.b16 %v343
      %v357 = vunpack.c.l.b16 %v344
      %v358 = vunpack.c.h.b16 %v344
      %v359 = vunpack.c.l.b16 %v345
      %v360 = vunpack.c.h.b16 %v345
      %v361 = vpack.c.b16 %v351, %v351
      %v362 = vpack.c.b16 %v352, %v352
      %v363 = vpack.c.b16 %v353, %v353
      %v364 = vpack.c.b16 %v354, %v354
      %v365 = vpack.c.b16 %v355, %v355
      %v366 = vpack.c.b16 %v356, %v356
      %v367 = vpack.c.b16 %v357, %v357
      %v368 = vpack.c.b16 %v358, %v358
      %v369 = vpack.c.b16 %v359, %v359
      %v370 = vpack.c.b16 %v360, %v360
      %vm381 = vcmask 257024
      %382 = vst.msk [vmem:[%s172] sm:$0xf] %vm381, %v361
      %383 = vst.msk [vmem:[%s172 + $0x4] sm:$0xf] %vm381, %v362
      %384 = vst.msk [vmem:[%s172 + $0x8] sm:$0xf] %vm381, %v363
      %385 = vst.msk [vmem:[%s172 + $0xc] sm:$0xf] %vm381, %v364
      %386 = vst.msk [vmem:[%s172 + $0x10] sm:$0xf] %vm381, %v365
      %387 = vst.msk [vmem:[%s172 + $0x14] sm:$0xf] %vm381, %v366
      %388 = vst.msk [vmem:[%s172 + $0x18] sm:$0xf] %vm381, %v367
      %389 = vst.msk [vmem:[%s172 + $0x1c] sm:$0xf] %vm381, %v368
      %390 = vst.msk [vmem:[%s172 + $0x20] sm:$0xf] %vm381, %v369
      %391 = vst.msk [vmem:[%s172 + $0x24] sm:$0xf] %vm381, %v370
      %s392 = smul.u32 10, %s14
      %p393 = scmp.lt.s32.totalorder %s392, 19
      %s394 = scalar_select %p393, %s392, 19
      %s395 = smul.addr %s394, 4
      %s396 = scalar_lea.vmem %s3, %s395
      // Predicated region
      $region33: #{tpu_custom_call.1} parent=31 // pred_check
        %p397 = pneg %p100
      $region34: #{tpu_custom_call.1} parent=31 // pred_check_branch
        %399 = sbr.rel (%p397) target = $region36
      $region35: #{tpu_custom_call.1} parent=31 // pred_region
        %s400 = smul.u32 10, %s14
      $region36: #{tpu_custom_call.1} parent=31 // pred_fallthru
        _
    $region32: #{tpu_custom_call.1} parent=5 // pred_fallthru
      _
    %p401 = scmp.le.s32.totalorder 2, %s9
    // Predicated region
    $region37: #{tpu_custom_call.1} parent=5 // pred_check
      %p402 = pneg %p401
    $region38: #{tpu_custom_call.1} parent=5 // pred_check_branch
      %404 = sbr.rel (%p402) target = $region40
    $region39: #{tpu_custom_call.1} parent=5 // pred_region
      %s405 = ssub.s32 %s9, 2
      // Predicated region
      $region41: #{tpu_custom_call.1} parent=39 // pred_check
        %p406 = pneg %p106
      $region42: #{tpu_custom_call.1} parent=39 // pred_check_branch
        %408 = sbr.rel (%p406) target = $region44
      $region43: #{tpu_custom_call.1} parent=39 // pred_region
        %s409 = smul.u32 10, %s15
        %p410 = scmp.lt.s32.totalorder %s409, 19
        %s411 = scalar_select %p410, %s409, 19
        %s412 = smul.addr %s411, 4
        %s413 = scalar_lea.vmem %s3, %s412
      $region44: #{tpu_custom_call.1} parent=39 // pred_fallthru
        _
    $region40: #{tpu_custom_call.1} parent=5 // pred_fallthru
      _
  $region6: #{tpu_custom_call.1} parent=0 // loop_footer
    %s13 = sadd.s32 1, %s9
  $region7: #{tpu_custom_call.1} parent=0 // loop_footer_branch
    %8 = sbr.rel target = $region3
  $region8: #{tpu_custom_call.1} parent=0 // loop_exit
    _

</llo_original>
